<compile_context>
chip_gen: v6e
topology: v6e:2x2x1
jax: 0.10.0
libtpu: 0.0.40
codegen_flags: <defaults>
</compile_context>

<pallas_src>
import functools

import jax
import jax.numpy as jnp
from jax.experimental import pallas as pl
from jax.experimental.pallas import tpu as pltpu

KH = KW = 3
GN_EPS = 1e-5


def _output_kernel(x_ref, e_ref, w_ref, b_ref, g_ref, bb_ref, o_ref, *, H, W):
    # x_ref : (1, Cx, H*W)   flattened x block                       (VMEM)
    # e_ref : (1, Ce, H*W)   flattened encoded_img block             (VMEM)
    # w_ref : (Cout, 9*Cin)  conv-form weight, K order = (kh,kw,ci)  (VMEM)
    # b_ref, g_ref, bb_ref : (Cout, 1) conv bias / GN gamma / GN beta (VMEM)
    # o_ref : (1, Cout, H*W) lane-dense output slab
    HW = H * W
    cx = x_ref.shape[1]
    ce = e_ref.shape[1]
    cin = cx + ce
    cout = o_ref.shape[1]

    # fused channel_concat: (Cin, HW)
    xe = jnp.concatenate([x_ref[0], e_ref[0]], axis=0)

    # lane column index (for horizontal border masking)
    ww = jax.lax.broadcasted_iota(jnp.int32, (1, HW), 1) % W

    def shift_lanes(a, off):
        # result[:, i] = a[:, i + off] for 0 <= i + off < HW, else 0
        if off == 0:
            return a
        if off > 0:
            return jnp.concatenate(
                [a[:, off:], jnp.zeros((cin, off), jnp.float32)], axis=1)
        o = -off
        return jnp.concatenate(
            [jnp.zeros((cin, o), jnp.float32), a[:, :HW - o]], axis=1)

    # im2col: 9 shifted copies of the (Cin, HW) slab, stacked along sublanes.
    # Vertical (row) out-of-range positions land outside [0, HW) and are
    # zero-filled by shift_lanes; only horizontal wraparound needs a mask.
    chunks = []
    for kh in range(KH):
        dh = kh - 1
        for kw in range(KW):
            dw = kw - 1
            s = shift_lanes(xe, dh * W + dw)
            if dw == -1:
                s = jnp.where(ww >= 1, s, 0.0)
            elif dw == 1:
                s = jnp.where(ww <= W - 2, s, 0.0)
            chunks.append(s)
    patches = jnp.concatenate(chunks, axis=0)                # (9*Cin, HW)

    # 3x3 conv (with fused channel concat) as one MXU matmul.
    y = jnp.dot(w_ref[...], patches,
                preferred_element_type=jnp.float32)          # (Cout, HW)
    y = y + b_ref[...]                                       # (Cout,1) bcast

    # GroupNorm(num_groups=1): single-pass stats over all (Cout, HW) elements.
    n_elems = float(cout * HW)
    mean = jnp.sum(y) / n_elems
    var = jnp.sum(y * y) / n_elems - mean * mean
    inv = jax.lax.rsqrt(var + GN_EPS)

    out = (y - mean) * inv * g_ref[...] + bb_ref[...]
    o_ref[0] = jax.nn.sigmoid(out)                           # full-tile store


def output_forward(x, encoded_img, w_ct, b, gamma, beta):
    """x: (N,Cx,H,W), encoded_img: (N,Ce,H,W), w_ct: ConvTranspose2d weight (Cin,Cout,3,3)."""
    N, cx, H, W = x.shape
    ce = encoded_img.shape[1]
    cin = cx + ce
    cout = w_ct.shape[1]
    HW = H * W
    assert w_ct.shape == (cin, cout, KH, KW)

    # ConvTranspose2d(stride=1, padding=1) weight -> forward-conv weight,
    # then lay K out as (kh, kw, ci) to match the patch stacking order.
    w_conv = jnp.transpose(w_ct, (1, 0, 2, 3))[:, :, ::-1, ::-1]        # (Cout, Cin, 3, 3)
    w_mat = jnp.transpose(w_conv, (0, 2, 3, 1)).reshape(cout, KH * KW * cin)
    w_mat = w_mat.astype(jnp.float32)

    # Lane-dense flatten of the spatial dims (metadata-only reshape, no pad).
    x_flat = x.reshape(N, cx, HW).astype(jnp.float32)
    e_flat = encoded_img.reshape(N, ce, HW).astype(jnp.float32)
    b2 = b.reshape(cout, 1).astype(jnp.float32)
    g2 = gamma.reshape(cout, 1).astype(jnp.float32)
    bb2 = beta.reshape(cout, 1).astype(jnp.float32)

    kernel = functools.partial(_output_kernel, H=H, W=W)
    out_flat = pl.pallas_call(
        kernel,
        out_shape=jax.ShapeDtypeStruct((N, cout, HW), jnp.float32),
        grid=(N,),
        in_specs=[
            pl.BlockSpec((1, cx, HW), lambda n: (n, 0, 0)),
            pl.BlockSpec((1, ce, HW), lambda n: (n, 0, 0)),
            pl.BlockSpec((cout, KH * KW * cin), lambda n: (0, 0)),   # weight
            pl.BlockSpec((cout, 1), lambda n: (0, 0)),               # conv bias
            pl.BlockSpec((cout, 1), lambda n: (0, 0)),               # GN gamma
            pl.BlockSpec((cout, 1), lambda n: (0, 0)),               # GN beta
        ],
        out_specs=pl.BlockSpec((1, cout, HW), lambda n: (n, 0, 0)),
        compiler_params=pltpu.CompilerParams(dimension_semantics=("parallel",)),
    )(x_flat, e_flat, w_mat, b2, g2, bb2)
    return out_flat.reshape(N, cout, H, W)


def _reference(x, encoded_img, w_ct, b, gamma, beta):
    """Pure-JAX reference matching PyTorch semantics."""
    xin = jnp.concatenate([x, encoded_img], axis=1)
    w_conv = jnp.transpose(w_ct, (1, 0, 2, 3))[:, :, ::-1, ::-1]        # (Cout, Cin, 3, 3)
    y = jax.lax.conv_general_dilated(
        xin, w_conv, window_strides=(1, 1), padding=((1, 1), (1, 1)),
        dimension_numbers=("NCHW", "OIHW", "NCHW"))
    y = y + b[None, :, None, None]
    mean = jnp.mean(y, axis=(1, 2, 3), keepdims=True)
    var = jnp.mean((y - mean) ** 2, axis=(1, 2, 3), keepdims=True)
    y = (y - mean) / jnp.sqrt(var + GN_EPS)
    y = y * gamma[None, :, None, None] + beta[None, :, None, None]
    return jax.nn.sigmoid(y)


if __name__ == "__main__":
    # Small shapes: x and encoded_img each 4 channels -> ConvTranspose2d in_channels=8.
    N, CX, CE, COUT, H, W = 2, 4, 4, 3, 16, 16
    CIN = CX + CE

    key = jax.random.PRNGKey(0)
    k1, k2, k3, k4, k5, k6 = jax.random.split(key, 6)
    w_ct = 0.1 * jax.random.normal(k1, (CIN, COUT, KH, KW), dtype=jnp.float32)
    b = 0.1 * jax.random.normal(k2, (COUT,), dtype=jnp.float32)
    gamma = 1.0 + 0.1 * jax.random.normal(k3, (COUT,), dtype=jnp.float32)
    beta = 0.1 * jax.random.normal(k4, (COUT,), dtype=jnp.float32)
    x = jax.random.normal(k5, (N, CX, H, W), dtype=jnp.float32)
    encoded_img = jax.random.normal(k6, (N, CE, H, W), dtype=jnp.float32)

    out = output_forward(x, encoded_img, w_ct, b, gamma, beta)
    out = jax.block_until_ready(out)

    ref = jax.block_until_ready(_reference(x, encoded_img, w_ct, b, gamma, beta))
    assert out.shape == (N, COUT, H, W)
    assert jnp.allclose(out, ref, atol=1e-5, rtol=1e-5), float(jnp.max(jnp.abs(out - ref)))

    print("KERNEL_OK")
</pallas_src>

<mosaic_0001>
module attributes {stable_mosaic.version = 11 : i64} {
  func.func @_output_kernel(%arg0: i32, %arg1: memref<1x4x256xf32, #tpu.memory_space<vmem>>, %arg2: memref<1x4x256xf32, #tpu.memory_space<vmem>>, %arg3: memref<3x72xf32, #tpu.memory_space<vmem>>, %arg4: memref<3x1xf32, #tpu.memory_space<vmem>>, %arg5: memref<3x1xf32, #tpu.memory_space<vmem>>, %arg6: memref<3x1xf32, #tpu.memory_space<vmem>>, %arg7: memref<1x3x256xf32, #tpu.memory_space<vmem>>) attributes {dimension_semantics = [#tpu.dimension_semantics<parallel>], iteration_bounds = array<i64: 2>, scalar_prefetch = 0 : i64, scratch_operands = 0 : i64, tpu.core_type = #tpu.core_type<tc>, window_params = [{transform_indices = @transform_0, window_bounds = array<i64: 1, 4, 256>}, {transform_indices = @transform_1, window_bounds = array<i64: 1, 4, 256>}, {pipeline_mode = #tpu.pipeline_mode<synchronous>, transform_indices = @transform_2, window_bounds = array<i64: 3, 72>}, {pipeline_mode = #tpu.pipeline_mode<synchronous>, transform_indices = @transform_3, window_bounds = array<i64: 3, 1>}, {pipeline_mode = #tpu.pipeline_mode<synchronous>, transform_indices = @transform_4, window_bounds = array<i64: 3, 1>}, {pipeline_mode = #tpu.pipeline_mode<synchronous>, transform_indices = @transform_5, window_bounds = array<i64: 3, 1>}, {transform_indices = @transform_6, window_bounds = array<i64: 1, 3, 256>}]} {
    %c0 = arith.constant 0 : index
    %c0_0 = arith.constant 0 : index
    %c0_1 = arith.constant 0 : index
    %0 = vector.load %arg1[%c0, %c0_0, %c0_1] : memref<1x4x256xf32, #tpu.memory_space<vmem>>, vector<1x4x256xf32>
    %1 = vector.shape_cast %0 : vector<1x4x256xf32> to vector<4x256xf32>
    %c0_2 = arith.constant 0 : index
    %c0_3 = arith.constant 0 : index
    %c0_4 = arith.constant 0 : index
    %2 = vector.load %arg2[%c0_2, %c0_3, %c0_4] : memref<1x4x256xf32, #tpu.memory_space<vmem>>, vector<1x4x256xf32>
    %3 = vector.shape_cast %2 : vector<1x4x256xf32> to vector<4x256xf32>
    %4 = tpu.concatenate %1, %3 in 0 : vector<4x256xf32>, vector<4x256xf32> -> vector<8x256xf32>
    %5 = tpu.iota {dimensions = array<i32: 1>} : vector<1x256xi32>
    %c16_i32 = arith.constant 16 : i32
    %c0_i32 = arith.constant 0 : i32
    %6 = arith.cmpi eq, %c16_i32, %c0_i32 : i32
    %c1_i32 = arith.constant 1 : i32
    %7 = arith.select %6, %c1_i32, %c16_i32 : i32
    %8 = vector.broadcast %7 : i32 to vector<1x256xi32>
    %9 = arith.remsi %5, %8 : vector<1x256xi32>
    %c0_i32_5 = arith.constant 0 : i32
    %10 = vector.broadcast %c0_i32_5 : i32 to vector<1x256xi32>
    %11 = arith.cmpi ne, %9, %10 : vector<1x256xi32>
    %c0_i32_6 = arith.constant 0 : i32
    %12 = vector.broadcast %c0_i32_6 : i32 to vector<1x256xi32>
    %13 = arith.cmpi slt, %9, %12 : vector<1x256xi32>
    %c0_i32_7 = arith.constant 0 : i32
    %14 = arith.cmpi slt, %7, %c0_i32_7 : i32
    %15 = vector.broadcast %14 : i1 to vector<1x256xi1>
    %16 = vector.broadcast %15 : vector<1x256xi1> to vector<1x256xi1>
    %17 = arith.xori %13, %16 : vector<1x256xi1>
    %18 = arith.andi %17, %11 : vector<1x256xi1>
    %19 = vector.broadcast %7 : i32 to vector<1x256xi32>
    %20 = arith.addi %9, %19 : vector<1x256xi32>
    %21 = arith.select %18, %20, %9 : vector<1x256xi1>, vector<1x256xi32>
    %cst = arith.constant 0.000000e+00 : f32
    %22 = vector.broadcast %cst : f32 to vector<8x17xf32>
    %23 = vector.extract_strided_slice %4 {offsets = [0, 0], sizes = [8, 239], strides = [1, 1]} : vector<8x256xf32> to vector<8x239xf32>
    %24 = tpu.concatenate %22, %23 in 1 : vector<8x17xf32>, vector<8x239xf32> -> vector<8x256xf32>
    %c1_i32_8 = arith.constant 1 : i32
    %25 = vector.broadcast %c1_i32_8 : i32 to vector<1x256xi32>
    %26 = arith.cmpi sge, %21, %25 : vector<1x256xi32>
    %cst_9 = arith.constant 0.000000e+00 : f32
    %27 = vector.shape_cast %26 : vector<1x256xi1> to vector<1x256xi1>
    %28 = vector.broadcast %27 : vector<1x256xi1> to vector<8x256xi1>
    %29 = vector.broadcast %cst_9 : f32 to vector<8x256xf32>
    %30 = arith.select %28, %24, %29 : vector<8x256xi1>, vector<8x256xf32>
    %cst_10 = arith.constant 0.000000e+00 : f32
    %31 = vector.broadcast %cst_10 : f32 to vector<8x16xf32>
    %32 = vector.extract_strided_slice %4 {offsets = [0, 0], sizes = [8, 240], strides = [1, 1]} : vector<8x256xf32> to vector<8x240xf32>
    %33 = tpu.concatenate %31, %32 in 1 : vector<8x16xf32>, vector<8x240xf32> -> vector<8x256xf32>
    %cst_11 = arith.constant 0.000000e+00 : f32
    %34 = vector.broadcast %cst_11 : f32 to vector<8x15xf32>
    %35 = vector.extract_strided_slice %4 {offsets = [0, 0], sizes = [8, 241], strides = [1, 1]} : vector<8x256xf32> to vector<8x241xf32>
    %36 = tpu.concatenate %34, %35 in 1 : vector<8x15xf32>, vector<8x241xf32> -> vector<8x256xf32>
    %c14_i32 = arith.constant 14 : i32
    %37 = vector.broadcast %c14_i32 : i32 to vector<1x256xi32>
    %38 = arith.cmpi sle, %21, %37 : vector<1x256xi32>
    %cst_12 = arith.constant 0.000000e+00 : f32
    %39 = vector.shape_cast %38 : vector<1x256xi1> to vector<1x256xi1>
    %40 = vector.broadcast %39 : vector<1x256xi1> to vector<8x256xi1>
    %41 = vector.broadcast %cst_12 : f32 to vector<8x256xf32>
    %42 = arith.select %40, %36, %41 : vector<8x256xi1>, vector<8x256xf32>
    %cst_13 = arith.constant 0.000000e+00 : f32
    %43 = vector.broadcast %cst_13 : f32 to vector<8x1xf32>
    %44 = vector.extract_strided_slice %4 {offsets = [0, 0], sizes = [8, 255], strides = [1, 1]} : vector<8x256xf32> to vector<8x255xf32>
    %45 = tpu.concatenate %43, %44 in 1 : vector<8x1xf32>, vector<8x255xf32> -> vector<8x256xf32>
    %c1_i32_14 = arith.constant 1 : i32
    %46 = vector.broadcast %c1_i32_14 : i32 to vector<1x256xi32>
    %47 = arith.cmpi sge, %21, %46 : vector<1x256xi32>
    %cst_15 = arith.constant 0.000000e+00 : f32
    %48 = vector.shape_cast %47 : vector<1x256xi1> to vector<1x256xi1>
    %49 = vector.broadcast %48 : vector<1x256xi1> to vector<8x256xi1>
    %50 = vector.broadcast %cst_15 : f32 to vector<8x256xf32>
    %51 = arith.select %49, %45, %50 : vector<8x256xi1>, vector<8x256xf32>
    %52 = vector.extract_strided_slice %4 {offsets = [0, 1], sizes = [8, 255], strides = [1, 1]} : vector<8x256xf32> to vector<8x255xf32>
    %cst_16 = arith.constant 0.000000e+00 : f32
    %53 = vector.broadcast %cst_16 : f32 to vector<8x1xf32>
    %54 = tpu.concatenate %52, %53 in 1 : vector<8x255xf32>, vector<8x1xf32> -> vector<8x256xf32>
    %c14_i32_17 = arith.constant 14 : i32
    %55 = vector.broadcast %c14_i32_17 : i32 to vector<1x256xi32>
    %56 = arith.cmpi sle, %21, %55 : vector<1x256xi32>
    %cst_18 = arith.constant 0.000000e+00 : f32
    %57 = vector.shape_cast %56 : vector<1x256xi1> to vector<1x256xi1>
    %58 = vector.broadcast %57 : vector<1x256xi1> to vector<8x256xi1>
    %59 = vector.broadcast %cst_18 : f32 to vector<8x256xf32>
    %60 = arith.select %58, %54, %59 : vector<8x256xi1>, vector<8x256xf32>
    %61 = vector.extract_strided_slice %4 {offsets = [0, 15], sizes = [8, 241], strides = [1, 1]} : vector<8x256xf32> to vector<8x241xf32>
    %cst_19 = arith.constant 0.000000e+00 : f32
    %62 = vector.broadcast %cst_19 : f32 to vector<8x15xf32>
    %63 = tpu.concatenate %61, %62 in 1 : vector<8x241xf32>, vector<8x15xf32> -> vector<8x256xf32>
    %c1_i32_20 = arith.constant 1 : i32
    %64 = vector.broadcast %c1_i32_20 : i32 to vector<1x256xi32>
    %65 = arith.cmpi sge, %21, %64 : vector<1x256xi32>
    %cst_21 = arith.constant 0.000000e+00 : f32
    %66 = vector.shape_cast %65 : vector<1x256xi1> to vector<1x256xi1>
    %67 = vector.broadcast %66 : vector<1x256xi1> to vector<8x256xi1>
    %68 = vector.broadcast %cst_21 : f32 to vector<8x256xf32>
    %69 = arith.select %67, %63, %68 : vector<8x256xi1>, vector<8x256xf32>
    %70 = vector.extract_strided_slice %4 {offsets = [0, 16], sizes = [8, 240], strides = [1, 1]} : vector<8x256xf32> to vector<8x240xf32>
    %cst_22 = arith.constant 0.000000e+00 : f32
    %71 = vector.broadcast %cst_22 : f32 to vector<8x16xf32>
    %72 = tpu.concatenate %70, %71 in 1 : vector<8x240xf32>, vector<8x16xf32> -> vector<8x256xf32>
    %73 = vector.extract_strided_slice %4 {offsets = [0, 17], sizes = [8, 239], strides = [1, 1]} : vector<8x256xf32> to vector<8x239xf32>
    %cst_23 = arith.constant 0.000000e+00 : f32
    %74 = vector.broadcast %cst_23 : f32 to vector<8x17xf32>
    %75 = tpu.concatenate %73, %74 in 1 : vector<8x239xf32>, vector<8x17xf32> -> vector<8x256xf32>
    %c14_i32_24 = arith.constant 14 : i32
    %76 = vector.broadcast %c14_i32_24 : i32 to vector<1x256xi32>
    %77 = arith.cmpi sle, %21, %76 : vector<1x256xi32>
    %cst_25 = arith.constant 0.000000e+00 : f32
    %78 = vector.shape_cast %77 : vector<1x256xi1> to vector<1x256xi1>
    %79 = vector.broadcast %78 : vector<1x256xi1> to vector<8x256xi1>
    %80 = vector.broadcast %cst_25 : f32 to vector<8x256xf32>
    %81 = arith.select %79, %75, %80 : vector<8x256xi1>, vector<8x256xf32>
    %82 = tpu.concatenate %30, %33, %42, %51, %4, %60, %69, %72, %81 in 0 : vector<8x256xf32>, vector<8x256xf32>, vector<8x256xf32>, vector<8x256xf32>, vector<8x256xf32>, vector<8x256xf32>, vector<8x256xf32>, vector<8x256xf32>, vector<8x256xf32> -> vector<72x256xf32>
    %c0_26 = arith.constant 0 : index
    %c0_27 = arith.constant 0 : index
    %83 = vector.load %arg3[%c0_26, %c0_27] : memref<3x72xf32, #tpu.memory_space<vmem>>, vector<3x72xf32>
    %cst_28 = arith.constant dense<0.000000e+00> : vector<3x256xf32>
    %84 = tpu.matmul %83, %82, %cst_28 {dimension_numbers = #tpu.dot_dimension_numbers<[1], [0], [0], [1], [0, 0, 1, 1], [], []>} : vector<3x72xf32>, vector<72x256xf32>, vector<3x256xf32> -> vector<3x256xf32>
    %c0_29 = arith.constant 0 : index
    %c0_30 = arith.constant 0 : index
    %85 = vector.load %arg4[%c0_29, %c0_30] : memref<3x1xf32, #tpu.memory_space<vmem>>, vector<3x1xf32>
    %86 = vector.broadcast %85 : vector<3x1xf32> to vector<3x256xf32>
    %87 = arith.addf %84, %86 : vector<3x256xf32>
    %88 = vector.shape_cast %87 : vector<3x256xf32> to vector<1x3x256xf32>
    %cst_31 = arith.constant dense<0.000000e+00> : vector<1xf32>
    %89 = vector.multi_reduction <add>, %88, %cst_31 [1, 2] : vector<1x3x256xf32> to vector<1xf32>
    %90 = vector.shape_cast %89 : vector<1xf32> to vector<1x1x1xf32>
    %91 = vector.extract %90[0, 0, 0] : f32 from vector<1x1x1xf32>
    %cst_32 = arith.constant 7.680000e+02 : f32
    %92 = arith.divf %91, %cst_32 : f32
    %93 = arith.mulf %87, %87 : vector<3x256xf32>
    %94 = vector.shape_cast %93 : vector<3x256xf32> to vector<1x3x256xf32>
    %cst_33 = arith.constant dense<0.000000e+00> : vector<1xf32>
    %95 = vector.multi_reduction <add>, %94, %cst_33 [1, 2] : vector<1x3x256xf32> to vector<1xf32>
    %96 = vector.shape_cast %95 : vector<1xf32> to vector<1x1x1xf32>
    %97 = vector.extract %96[0, 0, 0] : f32 from vector<1x1x1xf32>
    %cst_34 = arith.constant 7.680000e+02 : f32
    %98 = arith.divf %97, %cst_34 : f32
    %99 = arith.mulf %92, %92 : f32
    %100 = arith.subf %98, %99 : f32
    %cst_35 = arith.constant 9.99999974E-6 : f32
    %101 = arith.addf %100, %cst_35 : f32
    %102 = math.rsqrt %101 : f32
    %103 = vector.broadcast %92 : f32 to vector<3x256xf32>
    %104 = arith.subf %87, %103 : vector<3x256xf32>
    %105 = vector.broadcast %102 : f32 to vector<3x256xf32>
    %106 = arith.mulf %104, %105 : vector<3x256xf32>
    %c0_36 = arith.constant 0 : index
    %c0_37 = arith.constant 0 : index
    %107 = vector.load %arg5[%c0_36, %c0_37] : memref<3x1xf32, #tpu.memory_space<vmem>>, vector<3x1xf32>
    %108 = vector.broadcast %107 : vector<3x1xf32> to vector<3x256xf32>
    %109 = arith.mulf %106, %108 : vector<3x256xf32>
    %c0_38 = arith.constant 0 : index
    %c0_39 = arith.constant 0 : index
    %110 = vector.load %arg6[%c0_38, %c0_39] : memref<3x1xf32, #tpu.memory_space<vmem>>, vector<3x1xf32>
    %111 = vector.broadcast %110 : vector<3x1xf32> to vector<3x256xf32>
    %112 = arith.addf %109, %111 : vector<3x256xf32>
    %113 = arith.negf %112 : vector<3x256xf32>
    %114 = math.exp %113 : vector<3x256xf32>
    %cst_40 = arith.constant 1.000000e+00 : f32
    %115 = vector.broadcast %cst_40 : f32 to vector<3x256xf32>
    %116 = arith.addf %115, %114 : vector<3x256xf32>
    %117 = arith.divf %115, %116 : vector<3x256xf32>
    %c0_41 = arith.constant 0 : index
    %c0_42 = arith.constant 0 : index
    %c0_43 = arith.constant 0 : index
    %118 = vector.load %arg7[%c0_41, %c0_42, %c0_43] : memref<1x3x256xf32, #tpu.memory_space<vmem>>, vector<1x3x256xf32>
    %119 = vector.shape_cast %118 : vector<1x3x256xf32> to vector<3x256xf32>
    %120 = vector.shape_cast %117 : vector<3x256xf32> to vector<1x3x256xf32>
    tpu.vector_store %arg7[%c0_41, %c0_42, %c0_43], %120 {strides = array<i32>} : memref<1x3x256xf32, #tpu.memory_space<vmem>>, vector<1x3x256xf32>,
    return
  }
  func.func @transform_0(%arg0: i32) -> (i32, i32, i32) {
    %c0_i32 = arith.constant 0 : i32
    %c0_i32_0 = arith.constant 0 : i32
    %c0_i32_1 = arith.constant 0 : i32
    return %arg0, %c0_i32, %c0_i32_0 : i32, i32, i32
  }
  func.func @transform_1(%arg0: i32) -> (i32, i32, i32) {
    %c0_i32 = arith.constant 0 : i32
    %c0_i32_0 = arith.constant 0 : i32
    %c0_i32_1 = arith.constant 0 : i32
    return %arg0, %c0_i32, %c0_i32_0 : i32, i32, i32
  }
  func.func @transform_2(%arg0: i32) -> (i32, i32) {
    %c0_i32 = arith.constant 0 : i32
    %c0_i32_0 = arith.constant 0 : i32
    %c0_i32_1 = arith.constant 0 : i32
    return %c0_i32, %c0_i32_0 : i32, i32
  }
  func.func @transform_3(%arg0: i32) -> (i32, i32) {
    %c0_i32 = arith.constant 0 : i32
    %c0_i32_0 = arith.constant 0 : i32
    %c0_i32_1 = arith.constant 0 : i32
    return %c0_i32, %c0_i32_0 : i32, i32
  }
  func.func @transform_4(%arg0: i32) -> (i32, i32) {
    %c0_i32 = arith.constant 0 : i32
    %c0_i32_0 = arith.constant 0 : i32
    %c0_i32_1 = arith.constant 0 : i32
    return %c0_i32, %c0_i32_0 : i32, i32
  }
  func.func @transform_5(%arg0: i32) -> (i32, i32) {
    %c0_i32 = arith.constant 0 : i32
    %c0_i32_0 = arith.constant 0 : i32
    %c0_i32_1 = arith.constant 0 : i32
    return %c0_i32, %c0_i32_0 : i32, i32
  }
  func.func @transform_6(%arg0: i32) -> (i32, i32, i32) {
    %c0_i32 = arith.constant 0 : i32
    %c0_i32_0 = arith.constant 0 : i32
    %c0_i32_1 = arith.constant 0 : i32
    return %arg0, %c0_i32, %c0_i32_0 : i32, i32, i32
  }
}

</mosaic_0001>

<llo_original>
// kernel: tpu_custom_call.1
$region0: #{tpu_custom_call.1}
  #allocation0 [shape = 'u32[]', space=smem, size = 0x4, offset = 0x4, fixed_abs, tag = 'smem constant byte address 0x4 - core index']
  #allocation1 [shape = 'u32[144,128]{1,0:T(1,128)}', space=vmem, size = 0x12000, scoped, tag = 'internal scratch']
  %s0 = inlined_call_operand.hbm [shape: f32[2,4,256], index: 0, kind: input, shape index: {}]
  %s1 = inlined_call_operand.vmem [shape: f32[2,4,256], index: 1, kind: input, shape index: {}]
  %s2 = inlined_call_operand.hbm [shape: f32[3,72], index: 2, kind: input, shape index: {}]
  %s3 = inlined_call_operand.vmem [shape: f32[3,1], index: 3, kind: input, shape index: {}]
  %s4 = inlined_call_operand.vmem [shape: f32[3,1], index: 4, kind: input, shape index: {}]
  %s5 = inlined_call_operand.vmem [shape: f32[3,1], index: 5, kind: input, shape index: {}]
  %s6 = inlined_call_operand.vmem [shape: f32[2,3,256], index: 6, kind: output, shape index: {}]
  %s7 = sld [smem:[#allocation0]]
  $region65: #{tpu_custom_call.1} parent=0
    _
  %s9 = ssub.s32 1, %s7
  %s10 = scalar_select 0, %s9, %s7
  $region1: #{tpu_custom_call.1} parent=0
    #allocation2 [shape = 'u8[8192]{0}', space=vmem, size = 0x2000, scoped, tag = 'input window, operand 0']
    #allocation3 [shape = 's32[2]{0}', space=sflag, size = 0x8, scoped, tag = 'scoped memory for tpu_custom_call.1']
    #allocation4 [shape = 'u8[2048]{0}', space=vmem, size = 0x800, scoped, tag = 'input window, operand 2, single buffered']
    #allocation5 [shape = 's32[1]{0}', space=sflag, size = 0x4, scoped, tag = 'scoped memory for tpu_custom_call.1']
    %11 = vsyncpa [#allocation3], 0
    %s12 = scalar_lea.sflag [#allocation3], 1
    %13 = vsyncpa %s12, 0
    %14 = vsyncpa [#allocation5], 0
    loop: start=0, step=1, limit=4
    $region2: #{tpu_custom_call.1} parent=1 // loop_pre_header
      _
    $region3: #{tpu_custom_call.1} parent=1 // loop_header
      %s16 = sphi 0, %s20
      %p17 = scmp.ge.s32.totalorder %s16, 4
      %s26 = sphi 0, %s28
      %s29 = sphi 0, %s26
      %s30 = sphi 0, %s29
      %s46 = sphi 0, %s30
      %s52 = sphi 0, %s54
      %s55 = sphi 0, %s52
      %s56 = sphi 0, %s55
      %s72 = sphi 0, %s56
      %s76 = sphi 0, %s76
      %s78 = sphi 0, %s76
      %s79 = sphi 0, %s78
      %s93 = sphi 0, %s79
      %s97 = sphi 0, %s97
      %s99 = sphi 0, %s97
      %s100 = sphi 0, %s99
      %s114 = sphi 0, %s100
      %s118 = sphi 0, %s118
      %s120 = sphi 0, %s118
      %s121 = sphi 0, %s120
      %s135 = sphi 0, %s121
      %s139 = sphi 0, %s139
      %s141 = sphi 0, %s139
      %s142 = sphi 0, %s141
      %s156 = sphi 0, %s142
      %s162 = sphi 0, %s164
      %s165 = sphi 0, %s162
      %s166 = sphi 0, %s165
      %s182 = sphi 0, %s166
    $region4: #{tpu_custom_call.1} parent=1 // loop_header_branch
      %19 = sbr.rel (%p17) target = $region8
    $region5: #{tpu_custom_call.1} parent=1 // loop_body
      %s21 = ssub.s32 %s16, 1
      %s22 = ssub.s32 %s16, 2
      %s23 = sadd.s32 %s16, 1
      %s24 = ssub.s32 %s16, %s23
      %p25 = scmp.eq.s32.totalorder %s24, 0
      %s27 = sadd.s32 %s26, 1
      %s28 = scalar_select %p25, %s26, %s27
      %p31 = pneg %p25
      %p32 = scmp.eq.s32.totalorder %s16, 1
      %p33 = por %p31, %p32
      %p34 = scmp.ne.s32.totalorder %s26, %s29
      %p35 = scmp.eq.s32.totalorder %s16, 0
      %p36 = por %p34, %p35
      %p37 = scmp.ne.s32.totalorder %s26, %s29
      %p38 = scmp.eq.s32.totalorder %s21, 1
      %p39 = por %p37, %p38
      %p40 = scmp.ne.s32.totalorder %s29, %s30
      %p41 = scmp.eq.s32.totalorder %s21, 0
      %p42 = por %p40, %p41
      %p43 = scmp.ne.s32.totalorder %s29, %s30
      %p44 = scmp.eq.s32.totalorder %s22, 1
      %p45 = por %p43, %p44
      %p47 = scmp.ne.s32.totalorder %s30, %s46
      %p48 = scmp.eq.s32.totalorder %s22, 0
      %p49 = por %p47, %p48
      %s50 = ssub.s32 %s16, %s23
      %p51 = scmp.eq.s32.totalorder %s50, 0
      %s53 = sadd.s32 %s52, 1
      %s54 = scalar_select %p51, %s52, %s53
      %p57 = pneg %p51
      %p58 = scmp.eq.s32.totalorder %s16, 1
      %p59 = por %p57, %p58
      %p60 = scmp.ne.s32.totalorder %s52, %s55
      %p61 = scmp.eq.s32.totalorder %s16, 0
      %p62 = por %p60, %p61
      %p63 = scmp.ne.s32.totalorder %s52, %s55
      %p64 = scmp.eq.s32.totalorder %s21, 1
      %p65 = por %p63, %p64
      %p66 = scmp.ne.s32.totalorder %s55, %s56
      %p67 = scmp.eq.s32.totalorder %s21, 0
      %p68 = por %p66, %p67
      %p69 = scmp.ne.s32.totalorder %s55, %s56
      %p70 = scmp.eq.s32.totalorder %s22, 1
      %p71 = por %p69, %p70
      %p73 = scmp.ne.s32.totalorder %s56, %s72
      %p74 = scmp.eq.s32.totalorder %s22, 0
      %p75 = por %p73, %p74
      %s77 = sadd.s32 %s76, 1
      %p80 = scmp.eq.s32.totalorder %s16, 1
      %p81 = scmp.ne.s32.totalorder %s76, %s78
      %p82 = scmp.eq.s32.totalorder %s16, 0
      %p83 = por %p81, %p82
      %p84 = scmp.ne.s32.totalorder %s76, %s78
      %p85 = scmp.eq.s32.totalorder %s21, 1
      %p86 = por %p84, %p85
      %p87 = scmp.ne.s32.totalorder %s78, %s79
      %p88 = scmp.eq.s32.totalorder %s21, 0
      %p89 = por %p87, %p88
      %p90 = scmp.ne.s32.totalorder %s78, %s79
      %p91 = scmp.eq.s32.totalorder %s22, 1
      %p92 = por %p90, %p91
      %p94 = scmp.ne.s32.totalorder %s79, %s93
      %p95 = scmp.eq.s32.totalorder %s22, 0
      %p96 = por %p94, %p95
      %s98 = sadd.s32 %s97, 1
      %p101 = scmp.eq.s32.totalorder %s16, 1
      %p102 = scmp.ne.s32.totalorder %s97, %s99
      %p103 = scmp.eq.s32.totalorder %s16, 0
      %p104 = por %p102, %p103
      %p105 = scmp.ne.s32.totalorder %s97, %s99
      %p106 = scmp.eq.s32.totalorder %s21, 1
      %p107 = por %p105, %p106
      %p108 = scmp.ne.s32.totalorder %s99, %s100
      %p109 = scmp.eq.s32.totalorder %s21, 0
      %p110 = por %p108, %p109
      %p111 = scmp.ne.s32.totalorder %s99, %s100
      %p112 = scmp.eq.s32.totalorder %s22, 1
      %p113 = por %p111, %p112
      %p115 = scmp.ne.s32.totalorder %s100, %s114
      %p116 = scmp.eq.s32.totalorder %s22, 0
      %p117 = por %p115, %p116
      %s119 = sadd.s32 %s118, 1
      %p122 = scmp.eq.s32.totalorder %s16, 1
      %p123 = scmp.ne.s32.totalorder %s118, %s120
      %p124 = scmp.eq.s32.totalorder %s16, 0
      %p125 = por %p123, %p124
      %p126 = scmp.ne.s32.totalorder %s118, %s120
      %p127 = scmp.eq.s32.totalorder %s21, 1
      %p128 = por %p126, %p127
      %p129 = scmp.ne.s32.totalorder %s120, %s121
      %p130 = scmp.eq.s32.totalorder %s21, 0
      %p131 = por %p129, %p130
      %p132 = scmp.ne.s32.totalorder %s120, %s121
      %p133 = scmp.eq.s32.totalorder %s22, 1
      %p134 = por %p132, %p133
      %p136 = scmp.ne.s32.totalorder %s121, %s135
      %p137 = scmp.eq.s32.totalorder %s22, 0
      %p138 = por %p136, %p137
      %s140 = sadd.s32 %s139, 1
      %p143 = scmp.eq.s32.totalorder %s16, 1
      %p144 = scmp.ne.s32.totalorder %s139, %s141
      %p145 = scmp.eq.s32.totalorder %s16, 0
      %p146 = por %p144, %p145
      %p147 = scmp.ne.s32.totalorder %s139, %s141
      %p148 = scmp.eq.s32.totalorder %s21, 1
      %p149 = por %p147, %p148
      %p150 = scmp.ne.s32.totalorder %s141, %s142
      %p151 = scmp.eq.s32.totalorder %s21, 0
      %p152 = por %p150, %p151
      %p153 = scmp.ne.s32.totalorder %s141, %s142
      %p154 = scmp.eq.s32.totalorder %s22, 1
      %p155 = por %p153, %p154
      %p157 = scmp.ne.s32.totalorder %s142, %s156
      %p158 = scmp.eq.s32.totalorder %s22, 0
      %p159 = por %p157, %p158
      %s160 = ssub.s32 %s16, %s23
      %p161 = scmp.eq.s32.totalorder %s160, 0
      %s163 = sadd.s32 %s162, 1
      %s164 = scalar_select %p161, %s162, %s163
      %p167 = pneg %p161
      %p168 = scmp.eq.s32.totalorder %s16, 1
      %p169 = por %p167, %p168
      %p170 = scmp.ne.s32.totalorder %s162, %s165
      %p171 = scmp.eq.s32.totalorder %s16, 0
      %p172 = por %p170, %p171
      %p173 = scmp.ne.s32.totalorder %s162, %s165
      %p174 = scmp.eq.s32.totalorder %s21, 1
      %p175 = por %p173, %p174
      %p176 = scmp.ne.s32.totalorder %s165, %s166
      %p177 = scmp.eq.s32.totalorder %s21, 0
      %p178 = por %p176, %p177
      %p179 = scmp.ne.s32.totalorder %s165, %s166
      %p180 = scmp.eq.s32.totalorder %s22, 1
      %p181 = por %p179, %p180
      %p183 = scmp.ne.s32.totalorder %s166, %s182
      %p184 = scmp.eq.s32.totalorder %s22, 0
      %p185 = por %p183, %p184
      %p186 = scmp.le.s32.totalorder 1, %s16
      %p187 = scmp.lt.s32.totalorder %s16, 3
      %p188 = pnand %p186, %p187
      %p189 = pneg %p188
      // Predicated region
      $region9: #{tpu_custom_call.1} parent=5 // pred_check
        _
      $region10: #{tpu_custom_call.1} parent=5 // pred_check_branch
        %191 = sbr.rel (%p188) target = $region12
      $region11: #{tpu_custom_call.1} parent=5 // pred_region
        %s192 = ssub.s32 %s16, 1
        // Predicated region
        $region13: #{tpu_custom_call.1} parent=11 // pred_check
          %p193 = pneg %p89
        $region14: #{tpu_custom_call.1} parent=11 // pred_check_branch
          %195 = sbr.rel (%p193) target = $region16
        $region15: #{tpu_custom_call.1} parent=11 // pred_region
          %s197 = ssub.s32 64, 64
          %198 = vsyncadd [#allocation5], %s197
          %s200 = sshll.u32 [#allocation4], 4
          %s201 = int_to_ptr.vmem [resolvable:$true] %s200
          %203 = dma.hbm_to_vmem [thread:$0]  %s2, 64, %s201, [#allocation5]
        $region16: #{tpu_custom_call.1} parent=11 // pred_fallthru
          _
        // Predicated region
        $region17: #{tpu_custom_call.1} parent=11 // pred_check
          %p204 = pneg %p110
        $region18: #{tpu_custom_call.1} parent=11 // pred_check_branch
          %206 = sbr.rel (%p204) target = $region20
        $region19: #{tpu_custom_call.1} parent=11 // pred_region
          _
        $region20: #{tpu_custom_call.1} parent=11 // pred_fallthru
          _
        // Predicated region
        $region21: #{tpu_custom_call.1} parent=11 // pred_check
          %p207 = pneg %p131
        $region22: #{tpu_custom_call.1} parent=11 // pred_check_branch
          %209 = sbr.rel (%p207) target = $region24
        $region23: #{tpu_custom_call.1} parent=11 // pred_region
          _
        $region24: #{tpu_custom_call.1} parent=11 // pred_fallthru
          _
        // Predicated region
        $region25: #{tpu_custom_call.1} parent=11 // pred_check
          %p210 = pneg %p152
        $region26: #{tpu_custom_call.1} parent=11 // pred_check_branch
          %212 = sbr.rel (%p210) target = $region28
        $region27: #{tpu_custom_call.1} parent=11 // pred_region
          _
        $region28: #{tpu_custom_call.1} parent=11 // pred_fallthru
          _
      $region12: #{tpu_custom_call.1} parent=5 // pred_fallthru
        _
      %p213 = scmp.lt.s32.totalorder %s16, 2
      // Predicated region
      $region29: #{tpu_custom_call.1} parent=5 // pred_check
        %p214 = pneg %p213
      $region30: #{tpu_custom_call.1} parent=5 // pred_check_branch
        %216 = sbr.rel (%p214) target = $region32
      $region31: #{tpu_custom_call.1} parent=5 // pred_region
        // Predicated region
        $region33: #{tpu_custom_call.1} parent=31 // pred_check
          %p217 = pneg %p36
        $region34: #{tpu_custom_call.1} parent=31 // pred_check_branch
          %219 = sbr.rel (%p217) target = $region36
        $region35: #{tpu_custom_call.1} parent=31 // pred_region
          %s220 = sand.u32 %s26, 1
          %s221 = scalar_lea.sflag [#allocation3], %s220
          %s222 = sand.u32 %s26, 1
          %s223 = smul.addr %s222, 8
          %s224 = scalar_lea.vmem [#allocation2], %s223
          %s226 = ssub.s32 128, 128
          %227 = vsyncadd %s221, %s226
          %s228 = smul.addr %s16, 2
          %s229 = smul.addr %s228, 64
          %s230 = scalar_lea.hbm %s0, %s229
          %s232 = sshll.u32 %s224, 4
          %s233 = int_to_ptr.vmem [resolvable:$true] %s232
          %235 = dma.hbm_to_vmem [thread:$0]  %s230, 128, %s233, %s221
        $region36: #{tpu_custom_call.1} parent=31 // pred_fallthru
          _
        // Predicated region
        $region37: #{tpu_custom_call.1} parent=31 // pred_check
          %p236 = pneg %p62
        $region38: #{tpu_custom_call.1} parent=31 // pred_check_branch
          %238 = sbr.rel (%p236) target = $region40
        $region39: #{tpu_custom_call.1} parent=31 // pred_region
          %p239 = scmp.lt.s32.totalorder %s16, 1
          %s240 = scalar_select %p239, %s16, 1
          %s241 = smul.addr %s240, 2
          %s242 = smul.addr %s241, 4
          %s243 = scalar_lea.vmem %s1, %s242
        $region40: #{tpu_custom_call.1} parent=31 // pred_fallthru
          _
      $region32: #{tpu_custom_call.1} parent=5 // pred_fallthru
        _
      %p244 = scmp.le.s32.totalorder 1, %s16
      %p245 = scmp.lt.s32.totalorder %s16, 3
      %p246 = pnand %p244, %p245
      %p247 = pneg %p246
      // Predicated region
      $region41: #{tpu_custom_call.1} parent=5 // pred_check
        _
      $region42: #{tpu_custom_call.1} parent=5 // pred_check_branch
        %249 = sbr.rel (%p246) target = $region44
      $region43: #{tpu_custom_call.1} parent=5 // pred_region
        %s250 = ssub.s32 %s16, 1
        %s251 = sand.u32 %s29, 1
        %s252 = scalar_lea.sflag [#allocation3], %s251
        %s253 = sand.u32 %s29, 1
        %s254 = smul.addr %s253, 8
        %s255 = scalar_lea.vmem [#allocation2], %s254
        // Predicated region
        $region45: #{tpu_custom_call.1} parent=43 // pred_check
          %p256 = pneg %p42
        $region46: #{tpu_custom_call.1} parent=43 // pred_check_branch
          %258 = sbr.rel (%p256) target = $region48
        $region47: #{tpu_custom_call.1} parent=43 // pred_region
          %259 = dma.done %s252, 128
        $region48: #{tpu_custom_call.1} parent=43 // pred_fallthru
          _
        // Predicated region
        $region49: #{tpu_custom_call.1} parent=43 // pred_check
          %p260 = pneg %p89
        $region50: #{tpu_custom_call.1} parent=43 // pred_check_branch
          %262 = sbr.rel (%p260) target = $region52
        $region51: #{tpu_custom_call.1} parent=43 // pred_region
          %263 = dma.done [#allocation5], 64
        $region52: #{tpu_custom_call.1} parent=43 // pred_fallthru
          _
        %s264 = sand.u32 %s29, 1
        %s265 = scalar_lea.sflag [#allocation3], %s264
        %s266 = sand.u32 %s29, 1
        %s267 = smul.addr %s266, 8
        %s268 = scalar_lea.vmem [#allocation2], %s267
        %p269 = pneg %p42
        %p270 = pneg %p39
        %p271 = scmp.lt.s32.totalorder %s21, 1
        %s272 = scalar_select %p271, %s21, 1
        %s273 = smul.addr %s272, 2
        %s274 = smul.addr %s273, 4
        %s275 = scalar_lea.vmem %s1, %s274
        %p276 = pneg %p68
        %p277 = pneg %p65
        %p278 = pneg %p89
        %p279 = pneg %p86
        %p280 = pneg %p110
        %p281 = pneg %p107
        %p282 = pneg %p131
        %p283 = pneg %p128
        %p284 = pneg %p152
        %p285 = pneg %p149
        %p286 = pneg %p178
        %p287 = pneg %p175
        %p288 = scmp.lt.s32.totalorder %s21, 1
        %s289 = scalar_select %p288, %s21, 1
        %s290 = smul.addr %s289, 2
        %s291 = smul.addr %s290, 4
        %s292 = scalar_lea.vmem %s6, %s291
        %p293 = scmp.lt.s32.totalorder %s21, 1
        %s294 = scalar_select %p293, %s21, 1
        %s295 = smul.addr %s294, 2
        %s296 = smul.addr %s295, 4
        %s297 = scalar_lea.vmem %s1, %s296
        %p298 = scmp.lt.s32.totalorder %s21, 1
        %s299 = scalar_select %p298, %s21, 1
        %s300 = smul.addr %s299, 2
        %s301 = smul.addr %s300, 4
        %s302 = scalar_lea.vmem %s6, %s301
        %v303 = vld [vmem:[%s255] sm:$0xff]
        %v304 = vld [vmem:[%s297] sm:$0xff]
        %v306 = vcombine.high %v303, %v303
        %v309 = vcombine.low %v304, %v304
        %vm311 = vcmask 1043456
        %v312 = vsel %vm311, %v303, %v309
        %v313 = vsel %vm311, %v306, %v304
        %v314 = vlaneseq
        %v315 = vand.u32 %v314, 127
        %v316 = vadd.s32 %v315, 128
        %vm317 = vcmp.lt.s32.totalorder %v315, 0
        %v318 = vsub.s32 0, %v315
        %v319 = vsel %vm317, %v318, %v315
        %v320 = vshrl.u32 %v319, 4
        %v321 = vand.u32 %v319, 15
        %v322 = vsub.s32 0, %v321
        %v323 = vsel %vm317, %v322, %v321
        %vm324 = vcmp.lt.s32.totalorder %v316, 0
        %v325 = vsub.s32 0, %v316
        %v326 = vsel %vm324, %v325, %v316
        %v327 = vshrl.u32 %v326, 4
        %v328 = vand.u32 %v326, 15
        %v329 = vsub.s32 0, %v328
        %v330 = vsel %vm324, %v329, %v328
        %vm331 = vcmp.ne.s32.totalorder %v323, 0
        %vm332 = vcmp.ne.s32.totalorder %v330, 0
        %vm333 = vcmp.lt.s32.totalorder %v323, 0
        %vm334 = vcmp.lt.s32.totalorder %v330, 0
        %vm335 = vmand %vm333, %vm331
        %vm336 = vmand %vm334, %vm332
        %v337 = vadd.s32 %v323, 16
        %v338 = vadd.s32 %v330, 16
        %v339 = vsel %vm335, %v337, %v323
        %v340 = vsel %vm336, %v338, %v330
        %343 = vrot.lane.b32.xlu0 %v312, 17
        %v344 = vpop.permute.xlu0 %343
        %345 = vrot.lane.b32.xlu0 %v313, 17
        %v346 = vpop.permute.xlu0 %345
        %vm347 = vcmask 138240
        %v348 = vsel %vm347, %v344, %v346
        %v351 = vsel %vm347, 0.0, %v344
        %vm352 = vcmp.ge.s32.totalorder %v339, 1
        %vm353 = vcmp.ge.s32.totalorder %v340, 1
        %v354 = vsel %vm352, 1, 0
        %v355 = vsel %vm353, 1, 0
        %vm356 = vcmp.eq.s32.totalorder %v354, 1
        %vm357 = vcmp.eq.s32.totalorder %v355, 1
        %v358 = vsel %vm356, %v351, 0.0
        %v359 = vsel %vm357, %v348, 0.0
        %360 = vrot.lane.b32.xlu0 %v312, 16
        %v361 = vpop.permute.xlu0 %360
        %362 = vrot.lane.b32.xlu0 %v313, 16
        %v363 = vpop.permute.xlu0 %362
        %vm364 = vcmask 130048
        %v365 = vsel %vm364, %v361, %v363
        %v368 = vsel %vm364, 0.0, %v361
        %369 = vrot.lane.b32.xlu0 %v312, 15
        %v370 = vpop.permute.xlu0 %369
        %371 = vrot.lane.b32.xlu0 %v313, 15
        %v372 = vpop.permute.xlu0 %371
        %vm373 = vcmask 121856
        %v374 = vsel %vm373, %v370, %v372
        %v377 = vsel %vm373, 0.0, %v370
        %vm378 = vcmp.le.s32.totalorder %v339, 14
        %vm379 = vcmp.le.s32.totalorder %v340, 14
        %v380 = vsel %vm378, 1, 0
        %v381 = vsel %vm379, 1, 0
        %vm382 = vcmp.eq.s32.totalorder %v380, 1
        %vm383 = vcmp.eq.s32.totalorder %v381, 1
        %v384 = vsel %vm382, %v377, 0.0
        %v385 = vsel %vm383, %v374, 0.0
        %386 = vrot.lane.b32.xlu0 %v312, 1
        %v387 = vpop.permute.xlu0 %386
        %388 = vrot.lane.b32.xlu0 %v313, 1
        %v389 = vpop.permute.xlu0 %388
        %vm390 = vcmask 7168
        %v391 = vsel %vm390, %v387, %v389
        %v394 = vsel %vm390, 0.0, %v387
        %v395 = vsel %vm356, %v394, 0.0
        %v396 = vsel %vm357, %v391, 0.0
        %397 = vrot.lane.b32.xlu0 %v312, 127
        %v398 = vpop.permute.xlu0 %397
        %399 = vrot.lane.b32.xlu0 %v313, 127
        %v400 = vpop.permute.xlu0 %399
        %vm401 = vcmask 1039360
        %v402 = vsel %vm401, %v398, %v400
        %v405 = vsel %vm401, %v400, 0.0
        %v406 = vsel %vm382, %v402, 0.0
        %v407 = vsel %vm383, %v405, 0.0
        %408 = vrot.lane.b32.xlu0 %v312, 113
        %v409 = vpop.permute.xlu0 %408
        %410 = vrot.lane.b32.xlu0 %v313, 113
        %v411 = vpop.permute.xlu0 %410
        %vm412 = vcmask 924672
        %v413 = vsel %vm412, %v409, %v411
        %v416 = vsel %vm412, %v411, 0.0
        %v417 = vsel %vm356, %v413, 0.0
        %v418 = vsel %vm357, %v416, 0.0
        %419 = vrot.lane.b32.xlu0 %v312, 112
        %v420 = vpop.permute.xlu0 %419
        %421 = vrot.lane.b32.xlu0 %v313, 112
        %v422 = vpop.permute.xlu0 %421
        %vm423 = vcmask 916480
        %v424 = vsel %vm423, %v420, %v422
        %v427 = vsel %vm423, %v422, 0.0
        %428 = vrot.lane.b32.xlu0 %v312, 111
        %v429 = vpop.permute.xlu0 %428
        %430 = vrot.lane.b32.xlu0 %v313, 111
        %v431 = vpop.permute.xlu0 %430
        %vm432 = vcmask 908288
        %v433 = vsel %vm432, %v429, %v431
        %v436 = vsel %vm432, %v431, 0.0
        %v437 = vsel %vm382, %v433, 0.0
        %v438 = vsel %vm383, %v436, 0.0
        %v439 = vld [vmem:[#allocation4] sm:$0x7]
        %v440 = vld [vmem:[%s3] sm:$0x7]
        %442 = vset.pattern.permute.xlu0 0
        %443 = vperm.xlu0 %442, %v440
        %v444 = vpop.permute.xlu0 %443
        %vm446 = vcmask 588800
        %v448 = vsel %vm446, %v439, 0
        %450 = vmatprep.subr.mxu0 0.0
        %451 = vmatpush1.msra.mxu0 0.0
        %452 = vmatprep.subr.mxu0 0.0
        %453 = vmatpush1.msra.mxu0 0.0
        %454 = vmatprep.subr.mxu0 0.0
        %455 = vmatpush1.msra.mxu0 0.0
        %456 = vmatprep.subr.mxu0 0.0
        %457 = vmatpush1.msra.mxu0 0.0
        %458 = vmatprep.subr.mxu0 0.0
        %459 = vmatpush1.msra.mxu0 0.0
        %460 = vmatprep.subr.mxu0 0.0
        %461 = vmatpush1.msra.mxu0 0.0
        %462 = vmatprep.subr.mxu0 0.0
        %463 = vmatpush1.msra.mxu0 0.0
        %464 = vmatprep.subr.mxu0 %v438
        %465 = vmatpush1.msra.mxu0 %v437
        %466 = vmatprep.subr.mxu0 %v427
        %467 = vmatpush1.msra.mxu0 %v424
        %468 = vmatprep.subr.mxu0 %v418
        %469 = vmatpush1.msra.mxu0 %v417
        %470 = vmatprep.subr.mxu0 %v407
        %471 = vmatpush1.msra.mxu0 %v406
        %472 = vmatprep.subr.mxu0 %v313
        %473 = vmatpush1.msra.mxu0 %v312
        %474 = vmatprep.subr.mxu0 %v396
        %475 = vmatpush1.msra.mxu0 %v395
        %476 = vmatprep.subr.mxu0 %v385
        %477 = vmatpush1.msra.mxu0 %v384
        %478 = vmatprep.subr.mxu0 %v365
        %479 = vmatpush1.msra.mxu0 %v368
        %480 = vmatprep.subr.mxu0 %v359
        %481 = vmatpush1.msra.mxu0 %v358
        %482 = vmatprep.subr.mxu0 0.0
        %483 = vmatpush2.msra.mxu0 0.0
        %484 = vmatprep.subr.mxu0 0.0
        %485 = vmatpush2.msra.mxu0 0.0
        %486 = vmatprep.subr.mxu0 0.0
        %487 = vmatpush2.msra.mxu0 0.0
        %488 = vmatprep.subr.mxu0 0.0
        %489 = vmatpush2.msra.mxu0 0.0
        %490 = vmatprep.subr.mxu0 0.0
        %491 = vmatpush2.msra.mxu0 0.0
        %492 = vmatprep.subr.mxu0 0.0
        %493 = vmatpush2.msra.mxu0 0.0
        %494 = vmatprep.subr.mxu0 0.0
        %495 = vmatpush2.msra.mxu0 0.0
        %496 = vmatprep.subr.mxu0 0.0
        %497 = vmatpush2.msra.mxu0 0.0
        %498 = vmatprep.subr.mxu0 0.0
        %499 = vmatpush2.msra.mxu0 0.0
        %500 = vmatprep.subr.mxu0 0.0
        %501 = vmatpush2.msra.mxu0 0.0
        %502 = vmatprep.subr.mxu0 0.0
        %503 = vmatpush2.msra.mxu0 0.0
        %504 = vmatprep.subr.mxu0 0.0
        %505 = vmatpush2.msra.mxu0 0.0
        %506 = vmatprep.subr.mxu0 0.0
        %507 = vmatpush2.msra.mxu0 0.0
        %508 = vmatprep.subr.mxu0 0.0
        %509 = vmatpush2.msra.mxu0 0.0
        %510 = vmatprep.subr.mxu0 0.0
        %511 = vmatpush2.msra.mxu0 0.0
        %512 = vmatprep.subr.mxu0 0.0
        %513 = vmatpush2.msra.mxu0 0.0
        %514 = vmatprep.mubr.f32.mxu0 0.0
        %515 = vmatmul.mubr.f32.gmra.mxu0 %v448
        %v516 = vpop.f32.mrf.mxu0
        %v517 = vadd.f32 %v444, %v516
        %v518 = vpop.f32.mrf.mxu0
        %v519 = vadd.f32 %v444, %v518
        %520 = vdwg.mxu0
        %vm521 = vcmask 1042432
        %v522 = vsel %vm521, %v517, 0.0
        %v523 = vsel %vm521, %v519, 0.0
        %v524 = vadd.f32 %v522, %v523
        %525 = vadd.xlane.f32.xlu0 %v524
        %v526 = vpop.xlane.xlu0 %525
        %v527 = vrot.slane %v526, 4
        %v528 = vadd.f32 %v526, %v527
        %v529 = vrot.slane %v528, 2
        %v530 = vadd.f32 %v528, %v529
        %v531 = vrot.slane %v530, 1
        %v532 = vadd.f32 %v530, %v531
        %s533 = vtos %v532
        %v534 = vrcp.pop 768.0
        %s535 = vtos %v534
        %s536 = smul.f32 %s533, %s535
        %v537 = vmul.f32 %v517, %v517
        %v538 = vmul.f32 %v519, %v519
        %v539 = vsel %vm521, %v537, 0.0
        %v540 = vsel %vm521, %v538, 0.0
        %v541 = vadd.f32 %v539, %v540
        %542 = vadd.xlane.f32.xlu0 %v541
        %v543 = vpop.xlane.xlu0 %542
        %v544 = vrot.slane %v543, 4
        %v545 = vadd.f32 %v543, %v544
        %v546 = vrot.slane %v545, 2
        %v547 = vadd.f32 %v545, %v546
        %v548 = vrot.slane %v547, 1
        %v549 = vadd.f32 %v547, %v548
        %s550 = vtos %v549
        %v551 = vrcp.pop 768.0
        %s552 = vtos %v551
        %s553 = smul.f32 %s550, %s552
        %s554 = smul.f32 %s536, %s536
        %s555 = ssub.f32 %s553, %s554
        %s556 = sadd.f32 %s555, 1e-05
        %v557 = vstv %s556
        %v558 = vrsqrt.pop %v557
        %s559 = vtos %v558
        %v560 = vstv %s536
        %v561 = vsub.f32 %v517, %v560
        %v562 = vsub.f32 %v519, %v560
        %v563 = vstv %s559
        %v564 = vmul.f32 %v561, %v563
        %v565 = vmul.f32 %v562, %v563
        %v566 = vld [vmem:[%s4] sm:$0x7]
        %568 = vset.pattern.permute.xlu0 0
        %569 = vperm.xlu0 %568, %v566
        %v570 = vpop.permute.xlu0 %569
        %v572 = vmul.f32 %v564, %v570
        %v573 = vmul.f32 %v565, %v570
        %v574 = vld [vmem:[%s5] sm:$0x7]
        %576 = vset.pattern.permute.xlu0 0
        %577 = vperm.xlu0 %576, %v574
        %v578 = vpop.permute.xlu0 %577
        %v580 = vadd.f32 %v572, %v578
        %v581 = vadd.f32 %v573, %v578
        %v582 = vxor.u32 %v580, 2147483648
        %v583 = vxor.u32 %v581, 2147483648
        %v584 = vmul.f32 %v582, 1.442695
        %v585 = vpow.pop %v584
        %v586 = vmul.f32 %v583, 1.442695
        %v587 = vpow.pop %v586
        %v588 = vadd.f32 %v585, 1.0
        %v589 = vadd.f32 %v587, 1.0
        %v590 = vrcp.pop %v588
        %v591 = vmul.f32 1.0, %v590
        %v592 = vrcp.pop %v589
        %v593 = vmul.f32 1.0, %v592
        %v596 = vcombine.low %v591, %v593
        %598 = vst [vmem:[%s302] sm:$0x77] %v596
        %p599 = scmp.lt.s32.totalorder %s21, 1
        %s600 = scalar_select %p599, %s21, 1
        %s601 = smul.addr %s600, 2
        %s602 = smul.addr %s601, 4
        %s603 = scalar_lea.vmem %s6, %s602
        // Predicated region
        $region53: #{tpu_custom_call.1} parent=43 // pred_check
          %p604 = pneg %p175
        $region54: #{tpu_custom_call.1} parent=43 // pred_check_branch
          %606 = sbr.rel (%p604) target = $region56
        $region55: #{tpu_custom_call.1} parent=43 // pred_region
          _
        $region56: #{tpu_custom_call.1} parent=43 // pred_fallthru
          _
      $region44: #{tpu_custom_call.1} parent=5 // pred_fallthru
        _
      %p607 = scmp.le.s32.totalorder 2, %s16
      // Predicated region
      $region57: #{tpu_custom_call.1} parent=5 // pred_check
        %p608 = pneg %p607
      $region58: #{tpu_custom_call.1} parent=5 // pred_check_branch
        %610 = sbr.rel (%p608) target = $region60
      $region59: #{tpu_custom_call.1} parent=5 // pred_region
        %s611 = ssub.s32 %s16, 2
        // Predicated region
        $region61: #{tpu_custom_call.1} parent=59 // pred_check
          %p612 = pneg %p181
        $region62: #{tpu_custom_call.1} parent=59 // pred_check_branch
          %614 = sbr.rel (%p612) target = $region64
        $region63: #{tpu_custom_call.1} parent=59 // pred_region
          %p615 = scmp.lt.s32.totalorder %s22, 1
          %s616 = scalar_select %p615, %s22, 1
          %s617 = smul.addr %s616, 2
          %s618 = smul.addr %s617, 4
          %s619 = scalar_lea.vmem %s6, %s618
        $region64: #{tpu_custom_call.1} parent=59 // pred_fallthru
          _
      $region60: #{tpu_custom_call.1} parent=5 // pred_fallthru
        _
    $region6: #{tpu_custom_call.1} parent=1 // loop_footer
      %s20 = sadd.s32 1, %s16
    $region7: #{tpu_custom_call.1} parent=1 // loop_footer_branch
      %15 = sbr.rel target = $region3
    $region8: #{tpu_custom_call.1} parent=1 // loop_exit
      _
    %620 = vsyncpa [#allocation3], 1
    %s621 = scalar_lea.sflag [#allocation3], 1
    %622 = vsyncpa %s621, 1
    %623 = vsyncpa [#allocation5], 1

</llo_original>
